<compile_context>
chip_gen: v7x
topology: tpu7x:2x2x1
jax: 0.10.0
libtpu: 0.0.40
codegen_flags: <defaults>
</compile_context>

<pallas_src>
import functools

import jax
import jax.numpy as jnp
from jax import lax
from jax.experimental import pallas as pl
from jax.experimental.pallas import tpu as pltpu

EPS = 1e-5


def double_conv_kernel(x_ref, bw1_ref, g1_ref, bt1_ref,
                       bw2_ref, g2_ref, bt2_ref, o_ref,
                       *, H, W, Cout):
    NH = x_ref.shape[0]

    # Per-row image-boundary masks (flattened row r is image row r % H).
    h_of_row = lax.broadcasted_iota(jnp.int32, (NH, 1), 0) % H
    top = h_of_row == 0
    bot = h_of_row == H - 1

    def conv3x3(x2d, bw_ref):
        """3x3 'same' conv as 3 banded bf16 matmuls (one per vertical tap)."""
        # Row r of x_up holds image row r-1; row r of x_dn holds image row r+1.
        # pltpu.roll wraps around, but the top/bot masks zero exactly those
        # rows (image borders AND cross-image bleed), so semantics match
        # zero-padded 'same' convolution.
        x_up = jnp.where(top, 0.0, pltpu.roll(x2d, shift=1, axis=0))
        x_dn = jnp.where(bot, 0.0, pltpu.roll(x2d, shift=NH - 1, axis=0))  # == -1
        acc = jnp.dot(x_up.astype(jnp.bfloat16), bw_ref[0],
                      preferred_element_type=jnp.float32)
        acc = acc + jnp.dot(x2d.astype(jnp.bfloat16), bw_ref[1],
                            preferred_element_type=jnp.float32)
        acc = acc + jnp.dot(x_dn.astype(jnp.bfloat16), bw_ref[2],
                            preferred_element_type=jnp.float32)
        return acc  # (NH, W*Cout) f32

    log2_w = W.bit_length() - 1  # W is a power of two (asserted in wrapper)

    def pool_lanes(v):
        """Sum equal-channel lanes across the W groups via log2(W) lane rolls."""
        for k in range(log2_w):
            v = v + pltpu.roll(v, shift=Cout << k, axis=1)
        return v  # per-channel total, already broadcast over every w-group

    def bn_relu(y, g_ref, bt_ref):
        """Batch-stats BatchNorm fused to a single scale/shift FMA, then ReLU."""
        s1 = pool_lanes(jnp.sum(y, axis=0, keepdims=True))      # (1, W*Cout) f32
        s2 = pool_lanes(jnp.sum(y * y, axis=0, keepdims=True))  # (1, W*Cout) f32
        inv_cnt = 1.0 / float(NH * W)                            # elems per channel
        mu = s1 * inv_cnt
        # One-pass biased variance; clamp against tiny negative round-off.
        # TODO(synk): use a centered/Welford two-phase form when scaling up.
        var = jnp.maximum(s2 * inv_cnt - mu * mu, 0.0)
        scale = g_ref[...] * lax.rsqrt(var + EPS)
        shift = bt_ref[...] - mu * scale
        return jnp.maximum(y * scale + shift, 0.0)

    y1 = bn_relu(conv3x3(x_ref[...], bw1_ref), g1_ref, bt1_ref)
    y2 = bn_relu(conv3x3(y1, bw2_ref), g2_ref, bt2_ref)
    o_ref[...] = y2


def _banded_weights(w_oihw, W):
    """Torch conv weight (Cout, Cin, 3, 3) -> (3, W*Cin, W*Cout) bf16 banded mats.

    B[ky, wi*Cin + ci, wo*Cout + co] = w[co, ci, ky, kx] with wi = wo + kx - 1;
    entries with wo + kx - 1 outside [0, W) stay zero, i.e. the horizontal
    zero-padding is folded into the weights.  Emitted in bf16 (MXU-native;
    halves weight VMEM/DMA).
    """
    Cout, Cin = w_oihw.shape[0], w_oihw.shape[1]
    w = jnp.transpose(w_oihw, (2, 3, 1, 0)).astype(jnp.float32)  # (ky, kx, Cin, Cout)
    B = jnp.zeros((3, W * Cin, W * Cout), jnp.float32)
    for kx in range(3):
        for wo in range(W):
            wi = wo + kx - 1
            if 0 <= wi < W:
                B = B.at[:, wi * Cin:(wi + 1) * Cin,
                         wo * Cout:(wo + 1) * Cout].set(w[:, kx])
    return B.astype(jnp.bfloat16)


@jax.jit
def inconv_forward(x_nchw, params):
    """x_nchw: (N, C_in, H, W) float32. Returns (N, C_out, H, W) float32."""
    N, Cin, H, W = x_nchw.shape
    Cout = params["w1"].shape[0]
    assert W & (W - 1) == 0, "roll-based BN pooling requires W to be a power of two"

    # NCHW -> lane-folded (N*H, W*Cin)
    # TODO(synk): at real sizes keep the folded layout across UNet blocks
    # instead of transposing around every pallas_call.
    x2d = jnp.transpose(x_nchw, (0, 2, 3, 1)).astype(jnp.float32)
    x2d = x2d.reshape(N * H, W * Cin)

    bw1 = _banded_weights(params["w1"], W)           # (3, W*Cin,  W*Cout) bf16
    bw2 = _banded_weights(params["w2"], W)           # (3, W*Cout, W*Cout) bf16

    def fold(v):  # per-channel vector -> (1, W*Cout), lane-folded, f32
        return jnp.tile(v.astype(jnp.float32), W).reshape(1, W * Cout)

    # Explicit VMEM budget (v7x: 64 MiB physical, 32 MiB scoped default).
    operand_bytes = (x2d.size * x2d.dtype.itemsize
                     + bw1.size * bw1.dtype.itemsize
                     + bw2.size * bw2.dtype.itemsize
                     + 4 * W * Cout * 4
                     + N * H * W * Cout * 4)
    vmem_limit = min(4 * int(operand_bytes) + (4 << 20), 64 << 20)

    vmem = pl.BlockSpec(memory_space=pltpu.MemorySpace.VMEM)
    out2d = pl.pallas_call(
        functools.partial(double_conv_kernel, H=H, W=W, Cout=Cout),
        out_shape=jax.ShapeDtypeStruct((N * H, W * Cout), jnp.float32),
        in_specs=[vmem] * 7,
        out_specs=vmem,
        compiler_params=pltpu.CompilerParams(vmem_limit_bytes=vmem_limit),
    )(x2d, bw1, fold(params["g1"]), fold(params["bt1"]),
      bw2, fold(params["g2"]), fold(params["bt2"]))

    # (N*H, W*Cout) -> (N, H, W, Cout) -> NCHW
    return jnp.transpose(out2d.reshape(N, H, W, Cout), (0, 3, 1, 2))


def reference_forward(x, params):
    """Pure-JAX f32 reference in NCHW (mirrors the PyTorch module, biases incl.)."""
    def conv(x, w, b):
        y = lax.conv_general_dilated(
            x, w, window_strides=(1, 1), padding="SAME",
            dimension_numbers=("NCHW", "OIHW", "NCHW"))
        return y + b[None, :, None, None]

    def bn_relu(y, g, bt):
        mu = jnp.mean(y, axis=(0, 2, 3), keepdims=True)
        var = jnp.mean((y - mu) ** 2, axis=(0, 2, 3), keepdims=True)
        y = (y - mu) * lax.rsqrt(var + EPS)
        y = y * g[None, :, None, None] + bt[None, :, None, None]
        return jnp.maximum(y, 0.0)

    y = bn_relu(conv(x, params["w1"], params["b1"]), params["g1"], params["bt1"])
    y = bn_relu(conv(y, params["w2"], params["b2"]), params["g2"], params["bt2"])
    return y


def make_params(key, in_ch, out_ch):
    ks = jax.random.split(key, 10)
    return {
        "w1": 0.2 * jax.random.normal(ks[0], (out_ch, in_ch, 3, 3), jnp.float32),
        "b1": 0.1 * jax.random.normal(ks[1], (out_ch,), jnp.float32),
        "g1": 1.0 + 0.1 * jax.random.normal(ks[2], (out_ch,), jnp.float32),
        "bt1": 0.1 * jax.random.normal(ks[3], (out_ch,), jnp.float32),
        "w2": 0.2 * jax.random.normal(ks[4], (out_ch, out_ch, 3, 3), jnp.float32),
        "b2": 0.1 * jax.random.normal(ks[5], (out_ch,), jnp.float32),
        "g2": 1.0 + 0.1 * jax.random.normal(ks[6], (out_ch,), jnp.float32),
        "bt2": 0.1 * jax.random.normal(ks[7], (out_ch,), jnp.float32),
    }


if __name__ == "__main__":
    key = jax.random.PRNGKey(0)
    k_param, k_x = jax.random.split(key)

    in_ch, out_ch = 4, 8
    N, H, W = 2, 16, 16

    params = make_params(k_param, in_ch, out_ch)
    x = jax.random.normal(k_x, (N, in_ch, H, W), jnp.float32)

    y = jax.block_until_ready(inconv_forward(x, params))
    y_ref = jax.block_until_ready(reference_forward(x, params))

    assert y.shape == (N, out_ch, H, W), y.shape
    # Kernel uses bf16 MXU operands (per perf review) vs. a pure-f32 reference,
    # so per-element error is ~1e-2 scale on O(1) BN-normalized outputs.
    max_abs = float(jnp.max(jnp.abs(y - y_ref)))
    rel_fro = float(jnp.sqrt(jnp.sum((y - y_ref) ** 2) / jnp.sum(y_ref ** 2)))
    assert max_abs < 6e-2, ("max abs err", max_abs)
    assert rel_fro < 3e-2, ("rel frobenius err", rel_fro)
    print("KERNEL_OK")
</pallas_src>

<mosaic_0001>
module attributes {stable_mosaic.version = 11 : i64} {
  func.func @double_conv_kernel(%arg0: memref<32x64xf32, #tpu.memory_space<vmem>>, %arg1: memref<3x64x128xbf16, #tpu.memory_space<vmem>>, %arg2: memref<1x128xf32, #tpu.memory_space<vmem>>, %arg3: memref<1x128xf32, #tpu.memory_space<vmem>>, %arg4: memref<3x128x128xbf16, #tpu.memory_space<vmem>>, %arg5: memref<1x128xf32, #tpu.memory_space<vmem>>, %arg6: memref<1x128xf32, #tpu.memory_space<vmem>>, %arg7: memref<32x128xf32, #tpu.memory_space<vmem>>) attributes {dimension_semantics = [], scalar_prefetch = 0 : i64, scratch_operands = 0 : i64, tpu.core_type = #tpu.core_type<tc>} {
    %0 = tpu.iota {dimensions = array<i32: 0>} : vector<32x1xi32>
    %c16_i32 = arith.constant 16 : i32
    %c0_i32 = arith.constant 0 : i32
    %1 = arith.cmpi eq, %c16_i32, %c0_i32 : i32
    %c1_i32 = arith.constant 1 : i32
    %2 = arith.select %1, %c1_i32, %c16_i32 : i32
    %3 = vector.broadcast %2 : i32 to vector<32x1xi32>
    %4 = arith.remsi %0, %3 : vector<32x1xi32>
    %c0_i32_0 = arith.constant 0 : i32
    %5 = vector.broadcast %c0_i32_0 : i32 to vector<32x1xi32>
    %6 = arith.cmpi ne, %4, %5 : vector<32x1xi32>
    %c0_i32_1 = arith.constant 0 : i32
    %7 = vector.broadcast %c0_i32_1 : i32 to vector<32x1xi32>
    %8 = arith.cmpi slt, %4, %7 : vector<32x1xi32>
    %c0_i32_2 = arith.constant 0 : i32
    %9 = arith.cmpi slt, %2, %c0_i32_2 : i32
    %10 = vector.broadcast %9 : i1 to vector<32x1xi1>
    %11 = vector.broadcast %10 : vector<32x1xi1> to vector<32x1xi1>
    %12 = arith.xori %8, %11 : vector<32x1xi1>
    %13 = arith.andi %12, %6 : vector<32x1xi1>
    %14 = vector.broadcast %2 : i32 to vector<32x1xi32>
    %15 = arith.addi %4, %14 : vector<32x1xi32>
    %16 = arith.select %13, %15, %4 : vector<32x1xi1>, vector<32x1xi32>
    %c0_i32_3 = arith.constant 0 : i32
    %17 = vector.broadcast %c0_i32_3 : i32 to vector<32x1xi32>
    %18 = arith.cmpi eq, %16, %17 : vector<32x1xi32>
    %c15_i32 = arith.constant 15 : i32
    %19 = vector.broadcast %c15_i32 : i32 to vector<32x1xi32>
    %20 = arith.cmpi eq, %16, %19 : vector<32x1xi32>
    %c0 = arith.constant 0 : index
    %c0_4 = arith.constant 0 : index
    %21 = vector.load %arg0[%c0, %c0_4] : memref<32x64xf32, #tpu.memory_space<vmem>>, vector<32x64xf32>
    %c1_i32_5 = arith.constant 1 : i32
    %22 = tpu.dynamic_rotate %21 by %c1_i32_5 dim 0 : vector<32x64xf32>, i32 -> vector<32x64xf32>
    %cst = arith.constant 0.000000e+00 : f32
    %23 = vector.shape_cast %18 : vector<32x1xi1> to vector<32x1xi1>
    %24 = vector.broadcast %23 : vector<32x1xi1> to vector<32x64xi1>
    %25 = vector.broadcast %cst : f32 to vector<32x64xf32>
    %26 = arith.select %24, %25, %22 : vector<32x64xi1>, vector<32x64xf32>
    %c31_i32 = arith.constant 31 : i32
    %27 = tpu.dynamic_rotate %21 by %c31_i32 dim 0 : vector<32x64xf32>, i32 -> vector<32x64xf32>
    %cst_6 = arith.constant 0.000000e+00 : f32
    %28 = vector.shape_cast %20 : vector<32x1xi1> to vector<32x1xi1>
    %29 = vector.broadcast %28 : vector<32x1xi1> to vector<32x64xi1>
    %30 = vector.broadcast %cst_6 : f32 to vector<32x64xf32>
    %31 = arith.select %29, %30, %27 : vector<32x64xi1>, vector<32x64xf32>
    %32 = arith.truncf %26 : vector<32x64xf32> to vector<32x64xbf16>
    %c0_7 = arith.constant 0 : index
    %c0_8 = arith.constant 0 : index
    %c0_9 = arith.constant 0 : index
    %33 = vector.load %arg1[%c0_7, %c0_8, %c0_9] : memref<3x64x128xbf16, #tpu.memory_space<vmem>>, vector<1x64x128xbf16>
    %34 = vector.shape_cast %33 : vector<1x64x128xbf16> to vector<64x128xbf16>
    %cst_10 = arith.constant dense<0.000000e+00> : vector<32x128xf32>
    %35 = tpu.matmul %32, %34, %cst_10 {dimension_numbers = #tpu.dot_dimension_numbers<[1], [0], [0], [1], [0, 0, 1, 1], [], []>} : vector<32x64xbf16>, vector<64x128xbf16>, vector<32x128xf32> -> vector<32x128xf32>
    %36 = arith.truncf %21 : vector<32x64xf32> to vector<32x64xbf16>
    %c1 = arith.constant 1 : index
    %c0_11 = arith.constant 0 : index
    %c0_12 = arith.constant 0 : index
    %37 = vector.load %arg1[%c1, %c0_11, %c0_12] : memref<3x64x128xbf16, #tpu.memory_space<vmem>>, vector<1x64x128xbf16>
    %38 = vector.shape_cast %37 : vector<1x64x128xbf16> to vector<64x128xbf16>
    %cst_13 = arith.constant dense<0.000000e+00> : vector<32x128xf32>
    %39 = tpu.matmul %36, %38, %cst_13 {dimension_numbers = #tpu.dot_dimension_numbers<[1], [0], [0], [1], [0, 0, 1, 1], [], []>} : vector<32x64xbf16>, vector<64x128xbf16>, vector<32x128xf32> -> vector<32x128xf32>
    %40 = arith.addf %35, %39 : vector<32x128xf32>
    %41 = arith.truncf %31 : vector<32x64xf32> to vector<32x64xbf16>
    %c2 = arith.constant 2 : index
    %c0_14 = arith.constant 0 : index
    %c0_15 = arith.constant 0 : index
    %42 = vector.load %arg1[%c2, %c0_14, %c0_15] : memref<3x64x128xbf16, #tpu.memory_space<vmem>>, vector<1x64x128xbf16>
    %43 = vector.shape_cast %42 : vector<1x64x128xbf16> to vector<64x128xbf16>
    %cst_16 = arith.constant dense<0.000000e+00> : vector<32x128xf32>
    %44 = tpu.matmul %41, %43, %cst_16 {dimension_numbers = #tpu.dot_dimension_numbers<[1], [0], [0], [1], [0, 0, 1, 1], [], []>} : vector<32x64xbf16>, vector<64x128xbf16>, vector<32x128xf32> -> vector<32x128xf32>
    %45 = arith.addf %40, %44 : vector<32x128xf32>
    %cst_17 = arith.constant dense<0.000000e+00> : vector<128xf32>
    %46 = vector.multi_reduction <add>, %45, %cst_17 [0] : vector<32x128xf32> to vector<128xf32>
    %47 = vector.shape_cast %46 : vector<128xf32> to vector<1x128xf32>
    %c8_i32 = arith.constant 8 : i32
    %48 = tpu.dynamic_rotate %47 by %c8_i32 dim 1 : vector<1x128xf32>, i32 -> vector<1x128xf32>
    %49 = arith.addf %47, %48 : vector<1x128xf32>
    %c16_i32_18 = arith.constant 16 : i32
    %50 = tpu.dynamic_rotate %49 by %c16_i32_18 dim 1 : vector<1x128xf32>, i32 -> vector<1x128xf32>
    %51 = arith.addf %49, %50 : vector<1x128xf32>
    %c32_i32 = arith.constant 32 : i32
    %52 = tpu.dynamic_rotate %51 by %c32_i32 dim 1 : vector<1x128xf32>, i32 -> vector<1x128xf32>
    %53 = arith.addf %51, %52 : vector<1x128xf32>
    %c64_i32 = arith.constant 64 : i32
    %54 = tpu.dynamic_rotate %53 by %c64_i32 dim 1 : vector<1x128xf32>, i32 -> vector<1x128xf32>
    %55 = arith.addf %53, %54 : vector<1x128xf32>
    %56 = arith.mulf %45, %45 : vector<32x128xf32>
    %cst_19 = arith.constant dense<0.000000e+00> : vector<128xf32>
    %57 = vector.multi_reduction <add>, %56, %cst_19 [0] : vector<32x128xf32> to vector<128xf32>
    %58 = vector.shape_cast %57 : vector<128xf32> to vector<1x128xf32>
    %c8_i32_20 = arith.constant 8 : i32
    %59 = tpu.dynamic_rotate %58 by %c8_i32_20 dim 1 : vector<1x128xf32>, i32 -> vector<1x128xf32>
    %60 = arith.addf %58, %59 : vector<1x128xf32>
    %c16_i32_21 = arith.constant 16 : i32
    %61 = tpu.dynamic_rotate %60 by %c16_i32_21 dim 1 : vector<1x128xf32>, i32 -> vector<1x128xf32>
    %62 = arith.addf %60, %61 : vector<1x128xf32>
    %c32_i32_22 = arith.constant 32 : i32
    %63 = tpu.dynamic_rotate %62 by %c32_i32_22 dim 1 : vector<1x128xf32>, i32 -> vector<1x128xf32>
    %64 = arith.addf %62, %63 : vector<1x128xf32>
    %c64_i32_23 = arith.constant 64 : i32
    %65 = tpu.dynamic_rotate %64 by %c64_i32_23 dim 1 : vector<1x128xf32>, i32 -> vector<1x128xf32>
    %66 = arith.addf %64, %65 : vector<1x128xf32>
    %cst_24 = arith.constant 0.001953125 : f32
    %67 = vector.broadcast %cst_24 : f32 to vector<1x128xf32>
    %68 = arith.mulf %55, %67 : vector<1x128xf32>
    %cst_25 = arith.constant 0.001953125 : f32
    %69 = vector.broadcast %cst_25 : f32 to vector<1x128xf32>
    %70 = arith.mulf %66, %69 : vector<1x128xf32>
    %71 = arith.mulf %68, %68 : vector<1x128xf32>
    %72 = arith.subf %70, %71 : vector<1x128xf32>
    %cst_26 = arith.constant 0.000000e+00 : f32
    %73 = vector.broadcast %cst_26 : f32 to vector<1x128xf32>
    %74 = arith.maximumf %72, %73 : vector<1x128xf32>
    %c0_27 = arith.constant 0 : index
    %c0_28 = arith.constant 0 : index
    %75 = vector.load %arg2[%c0_27, %c0_28] : memref<1x128xf32, #tpu.memory_space<vmem>>, vector<1x128xf32>
    %cst_29 = arith.constant 9.99999974E-6 : f32
    %76 = vector.broadcast %cst_29 : f32 to vector<1x128xf32>
    %77 = arith.addf %74, %76 : vector<1x128xf32>
    %78 = math.rsqrt %77 : vector<1x128xf32>
    %79 = arith.mulf %75, %78 : vector<1x128xf32>
    %c0_30 = arith.constant 0 : index
    %c0_31 = arith.constant 0 : index
    %80 = vector.load %arg3[%c0_30, %c0_31] : memref<1x128xf32, #tpu.memory_space<vmem>>, vector<1x128xf32>
    %81 = arith.mulf %68, %79 : vector<1x128xf32>
    %82 = arith.subf %80, %81 : vector<1x128xf32>
    %83 = vector.broadcast %79 : vector<1x128xf32> to vector<32x128xf32>
    %84 = arith.mulf %45, %83 : vector<32x128xf32>
    %85 = vector.broadcast %82 : vector<1x128xf32> to vector<32x128xf32>
    %86 = arith.addf %84, %85 : vector<32x128xf32>
    %cst_32 = arith.constant 0.000000e+00 : f32
    %87 = vector.broadcast %cst_32 : f32 to vector<32x128xf32>
    %88 = arith.maximumf %86, %87 : vector<32x128xf32>
    %c1_i32_33 = arith.constant 1 : i32
    %89 = tpu.dynamic_rotate %88 by %c1_i32_33 dim 0 : vector<32x128xf32>, i32 -> vector<32x128xf32>
    %cst_34 = arith.constant 0.000000e+00 : f32
    %90 = vector.shape_cast %18 : vector<32x1xi1> to vector<32x1xi1>
    %91 = vector.broadcast %90 : vector<32x1xi1> to vector<32x128xi1>
    %92 = vector.broadcast %cst_34 : f32 to vector<32x128xf32>
    %93 = arith.select %91, %92, %89 : vector<32x128xi1>, vector<32x128xf32>
    %c31_i32_35 = arith.constant 31 : i32
    %94 = tpu.dynamic_rotate %88 by %c31_i32_35 dim 0 : vector<32x128xf32>, i32 -> vector<32x128xf32>
    %cst_36 = arith.constant 0.000000e+00 : f32
    %95 = vector.shape_cast %20 : vector<32x1xi1> to vector<32x1xi1>
    %96 = vector.broadcast %95 : vector<32x1xi1> to vector<32x128xi1>
    %97 = vector.broadcast %cst_36 : f32 to vector<32x128xf32>
    %98 = arith.select %96, %97, %94 : vector<32x128xi1>, vector<32x128xf32>
    %99 = arith.truncf %93 : vector<32x128xf32> to vector<32x128xbf16>
    %c0_37 = arith.constant 0 : index
    %c0_38 = arith.constant 0 : index
    %c0_39 = arith.constant 0 : index
    %100 = vector.load %arg4[%c0_37, %c0_38, %c0_39] : memref<3x128x128xbf16, #tpu.memory_space<vmem>>, vector<1x128x128xbf16>
    %101 = vector.shape_cast %100 : vector<1x128x128xbf16> to vector<128x128xbf16>
    %cst_40 = arith.constant dense<0.000000e+00> : vector<32x128xf32>
    %102 = tpu.matmul %99, %101, %cst_40 {dimension_numbers = #tpu.dot_dimension_numbers<[1], [0], [0], [1], [0, 0, 1, 1], [], []>} : vector<32x128xbf16>, vector<128x128xbf16>, vector<32x128xf32> -> vector<32x128xf32>
    %103 = arith.truncf %88 : vector<32x128xf32> to vector<32x128xbf16>
    %c1_41 = arith.constant 1 : index
    %c0_42 = arith.constant 0 : index
    %c0_43 = arith.constant 0 : index
    %104 = vector.load %arg4[%c1_41, %c0_42, %c0_43] : memref<3x128x128xbf16, #tpu.memory_space<vmem>>, vector<1x128x128xbf16>
    %105 = vector.shape_cast %104 : vector<1x128x128xbf16> to vector<128x128xbf16>
    %cst_44 = arith.constant dense<0.000000e+00> : vector<32x128xf32>
    %106 = tpu.matmul %103, %105, %cst_44 {dimension_numbers = #tpu.dot_dimension_numbers<[1], [0], [0], [1], [0, 0, 1, 1], [], []>} : vector<32x128xbf16>, vector<128x128xbf16>, vector<32x128xf32> -> vector<32x128xf32>
    %107 = arith.addf %102, %106 : vector<32x128xf32>
    %108 = arith.truncf %98 : vector<32x128xf32> to vector<32x128xbf16>
    %c2_45 = arith.constant 2 : index
    %c0_46 = arith.constant 0 : index
    %c0_47 = arith.constant 0 : index
    %109 = vector.load %arg4[%c2_45, %c0_46, %c0_47] : memref<3x128x128xbf16, #tpu.memory_space<vmem>>, vector<1x128x128xbf16>
    %110 = vector.shape_cast %109 : vector<1x128x128xbf16> to vector<128x128xbf16>
    %cst_48 = arith.constant dense<0.000000e+00> : vector<32x128xf32>
    %111 = tpu.matmul %108, %110, %cst_48 {dimension_numbers = #tpu.dot_dimension_numbers<[1], [0], [0], [1], [0, 0, 1, 1], [], []>} : vector<32x128xbf16>, vector<128x128xbf16>, vector<32x128xf32> -> vector<32x128xf32>
    %112 = arith.addf %107, %111 : vector<32x128xf32>
    %cst_49 = arith.constant dense<0.000000e+00> : vector<128xf32>
    %113 = vector.multi_reduction <add>, %112, %cst_49 [0] : vector<32x128xf32> to vector<128xf32>
    %114 = vector.shape_cast %113 : vector<128xf32> to vector<1x128xf32>
    %c8_i32_50 = arith.constant 8 : i32
    %115 = tpu.dynamic_rotate %114 by %c8_i32_50 dim 1 : vector<1x128xf32>, i32 -> vector<1x128xf32>
    %116 = arith.addf %114, %115 : vector<1x128xf32>
    %c16_i32_51 = arith.constant 16 : i32
    %117 = tpu.dynamic_rotate %116 by %c16_i32_51 dim 1 : vector<1x128xf32>, i32 -> vector<1x128xf32>
    %118 = arith.addf %116, %117 : vector<1x128xf32>
    %c32_i32_52 = arith.constant 32 : i32
    %119 = tpu.dynamic_rotate %118 by %c32_i32_52 dim 1 : vector<1x128xf32>, i32 -> vector<1x128xf32>
    %120 = arith.addf %118, %119 : vector<1x128xf32>
    %c64_i32_53 = arith.constant 64 : i32
    %121 = tpu.dynamic_rotate %120 by %c64_i32_53 dim 1 : vector<1x128xf32>, i32 -> vector<1x128xf32>
    %122 = arith.addf %120, %121 : vector<1x128xf32>
    %123 = arith.mulf %112, %112 : vector<32x128xf32>
    %cst_54 = arith.constant dense<0.000000e+00> : vector<128xf32>
    %124 = vector.multi_reduction <add>, %123, %cst_54 [0] : vector<32x128xf32> to vector<128xf32>
    %125 = vector.shape_cast %124 : vector<128xf32> to vector<1x128xf32>
    %c8_i32_55 = arith.constant 8 : i32
    %126 = tpu.dynamic_rotate %125 by %c8_i32_55 dim 1 : vector<1x128xf32>, i32 -> vector<1x128xf32>
    %127 = arith.addf %125, %126 : vector<1x128xf32>
    %c16_i32_56 = arith.constant 16 : i32
    %128 = tpu.dynamic_rotate %127 by %c16_i32_56 dim 1 : vector<1x128xf32>, i32 -> vector<1x128xf32>
    %129 = arith.addf %127, %128 : vector<1x128xf32>
    %c32_i32_57 = arith.constant 32 : i32
    %130 = tpu.dynamic_rotate %129 by %c32_i32_57 dim 1 : vector<1x128xf32>, i32 -> vector<1x128xf32>
    %131 = arith.addf %129, %130 : vector<1x128xf32>
    %c64_i32_58 = arith.constant 64 : i32
    %132 = tpu.dynamic_rotate %131 by %c64_i32_58 dim 1 : vector<1x128xf32>, i32 -> vector<1x128xf32>
    %133 = arith.addf %131, %132 : vector<1x128xf32>
    %cst_59 = arith.constant 0.001953125 : f32
    %134 = vector.broadcast %cst_59 : f32 to vector<1x128xf32>
    %135 = arith.mulf %122, %134 : vector<1x128xf32>
    %cst_60 = arith.constant 0.001953125 : f32
    %136 = vector.broadcast %cst_60 : f32 to vector<1x128xf32>
    %137 = arith.mulf %133, %136 : vector<1x128xf32>
    %138 = arith.mulf %135, %135 : vector<1x128xf32>
    %139 = arith.subf %137, %138 : vector<1x128xf32>
    %cst_61 = arith.constant 0.000000e+00 : f32
    %140 = vector.broadcast %cst_61 : f32 to vector<1x128xf32>
    %141 = arith.maximumf %139, %140 : vector<1x128xf32>
    %c0_62 = arith.constant 0 : index
    %c0_63 = arith.constant 0 : index
    %142 = vector.load %arg5[%c0_62, %c0_63] : memref<1x128xf32, #tpu.memory_space<vmem>>, vector<1x128xf32>
    %cst_64 = arith.constant 9.99999974E-6 : f32
    %143 = vector.broadcast %cst_64 : f32 to vector<1x128xf32>
    %144 = arith.addf %141, %143 : vector<1x128xf32>
    %145 = math.rsqrt %144 : vector<1x128xf32>
    %146 = arith.mulf %142, %145 : vector<1x128xf32>
    %c0_65 = arith.constant 0 : index
    %c0_66 = arith.constant 0 : index
    %147 = vector.load %arg6[%c0_65, %c0_66] : memref<1x128xf32, #tpu.memory_space<vmem>>, vector<1x128xf32>
    %148 = arith.mulf %135, %146 : vector<1x128xf32>
    %149 = arith.subf %147, %148 : vector<1x128xf32>
    %150 = vector.broadcast %146 : vector<1x128xf32> to vector<32x128xf32>
    %151 = arith.mulf %112, %150 : vector<32x128xf32>
    %152 = vector.broadcast %149 : vector<1x128xf32> to vector<32x128xf32>
    %153 = arith.addf %151, %152 : vector<32x128xf32>
    %cst_67 = arith.constant 0.000000e+00 : f32
    %154 = vector.broadcast %cst_67 : f32 to vector<32x128xf32>
    %155 = arith.maximumf %153, %154 : vector<32x128xf32>
    %c0_68 = arith.constant 0 : index
    %c0_69 = arith.constant 0 : index
    %156 = vector.load %arg7[%c0_68, %c0_69] : memref<32x128xf32, #tpu.memory_space<vmem>>, vector<32x128xf32>
    tpu.vector_store %arg7[%c0_68, %c0_69], %155 {strides = array<i32>} : memref<32x128xf32, #tpu.memory_space<vmem>>, vector<32x128xf32>,
    return
  }
}

</mosaic_0001>

<llo_original>
// kernel: tile.23
$region0: #{tile.23}
  #allocation0 [shape = 's32[1]{0}', space=sflag, size = 0x4, scoped, tag = 'scoped memory for tile.23']
  %s0 = inlined_call_operand.vmem [shape: f32[8], index: 0, kind: input, shape index: {}]
  %s1 = inlined_call_operand.vmem [shape: f32[16,8], index: 1, kind: output, shape index: {}]
  // Predicated region
  $region2: #{tile.23} parent=0 // pred_check
    _
  $region3: #{tile.23} parent=0 // pred_check_branch
    %3 = sbr.rel (0) target = $region5
  $region4: #{tile.23} parent=0 // pred_region
    _
  $region5: #{tile.23} parent=0 // pred_fallthru
    _
  %v4 = vld [vmem:[%s0] ss:$0 sm:$0xff]
  %5 = vst [vmem:[%s1] sm:$0xff] %v4
  %s6 = scalar_lea.vmem %s1, 8
  %7 = vst [vmem:[%s6] sm:$0xff] %v4

// kernel: tile.24
$region0: #{tile.24}
  %s0 = inlined_call_operand.vmem [shape: f32[16,8], index: 0, kind: input, shape index: {}]
  %s1 = inlined_call_operand.vmem [shape: f32[1,128], index: 1, kind: output, shape index: {}]
  $region1: #{tile.24} parent=0
    #allocation0 [shape = 'u8[4096]{0}', space=vmem, size = 0x1000, scoped, tag = 'scoped mem for output reshape']
    %v2 = vld [vmem:[%s0] sm:$0x1]
    %vm3 = vcmask 64512
    %4 = vst.msk [vmem:[#allocation0] sm:$0x1] %vm3, %v2
    %s5 = scalar_lea.vmem %s0, 15
    %v6 = vld [vmem:[%s5] sm:$0x1]
    %7 = vrot.lane.b32.xlu0 %v6, 120
    %v8 = vpop.permute.xlu0 %7
    %vm9 = vcmask 1048512
    %10 = vst.msk [vmem:[#allocation0] sm:$0x1] %vm9, %v8
    %s11 = scalar_lea.vmem %s0, 14
    %v12 = vld [vmem:[%s11] sm:$0x1]
    %13 = vrot.lane.b32.xlu0 %v12, 112
    %v14 = vpop.permute.xlu0 %13
    %vm15 = vcmask 982912
    %16 = vst.msk [vmem:[#allocation0] sm:$0x1] %vm15, %v14
    %s17 = scalar_lea.vmem %s0, 13
    %v18 = vld [vmem:[%s17] sm:$0x1]
    %19 = vrot.lane.b32.xlu0 %v18, 104
    %v20 = vpop.permute.xlu0 %19
    %vm21 = vcmask 917312
    %22 = vst.msk [vmem:[#allocation0] sm:$0x1] %vm21, %v20
    %s23 = scalar_lea.vmem %s0, 12
    %v24 = vld [vmem:[%s23] sm:$0x1]
    %25 = vrot.lane.b32.xlu0 %v24, 96
    %v26 = vpop.permute.xlu0 %25
    %vm27 = vcmask 851712
    %28 = vst.msk [vmem:[#allocation0] sm:$0x1] %vm27, %v26
    %s29 = scalar_lea.vmem %s0, 11
    %v30 = vld [vmem:[%s29] sm:$0x1]
    %31 = vrot.lane.b32.xlu0 %v30, 88
    %v32 = vpop.permute.xlu0 %31
    %vm33 = vcmask 786112
    %34 = vst.msk [vmem:[#allocation0] sm:$0x1] %vm33, %v32
    %s35 = scalar_lea.vmem %s0, 10
    %v36 = vld [vmem:[%s35] sm:$0x1]
    %37 = vrot.lane.b32.xlu0 %v36, 80
    %v38 = vpop.permute.xlu0 %37
    %vm39 = vcmask 720512
    %40 = vst.msk [vmem:[#allocation0] sm:$0x1] %vm39, %v38
    %s41 = scalar_lea.vmem %s0, 9
    %v42 = vld [vmem:[%s41] sm:$0x1]
    %43 = vrot.lane.b32.xlu0 %v42, 72
    %v44 = vpop.permute.xlu0 %43
    %vm45 = vcmask 654912
    %46 = vst.msk [vmem:[#allocation0] sm:$0x1] %vm45, %v44
    %s47 = scalar_lea.vmem %s0, 8
    %v48 = vld [vmem:[%s47] sm:$0x1]
    %49 = vrot.lane.b32.xlu0 %v48, 64
    %v50 = vpop.permute.xlu0 %49
    %vm51 = vcmask 589312
    %52 = vst.msk [vmem:[#allocation0] sm:$0x1] %vm51, %v50
    %s53 = scalar_lea.vmem %s0, 7
    %v54 = vld [vmem:[%s53] sm:$0x1]
    %55 = vrot.lane.b32.xlu0 %v54, 56
    %v56 = vpop.permute.xlu0 %55
    %vm57 = vcmask 523712
    %58 = vst.msk [vmem:[#allocation0] sm:$0x1] %vm57, %v56
    %s59 = scalar_lea.vmem %s0, 6
    %v60 = vld [vmem:[%s59] sm:$0x1]
    %61 = vrot.lane.b32.xlu0 %v60, 48
    %v62 = vpop.permute.xlu0 %61
    %vm63 = vcmask 458112
    %64 = vst.msk [vmem:[#allocation0] sm:$0x1] %vm63, %v62
    %s65 = scalar_lea.vmem %s0, 5
    %v66 = vld [vmem:[%s65] sm:$0x1]
    %67 = vrot.lane.b32.xlu0 %v66, 40
    %v68 = vpop.permute.xlu0 %67
    %vm69 = vcmask 392512
    %70 = vst.msk [vmem:[#allocation0] sm:$0x1] %vm69, %v68
    %s71 = scalar_lea.vmem %s0, 4
    %v72 = vld [vmem:[%s71] sm:$0x1]
    %73 = vrot.lane.b32.xlu0 %v72, 32
    %v74 = vpop.permute.xlu0 %73
    %vm75 = vcmask 326912
    %76 = vst.msk [vmem:[#allocation0] sm:$0x1] %vm75, %v74
    %s77 = scalar_lea.vmem %s0, 3
    %v78 = vld [vmem:[%s77] sm:$0x1]
    %79 = vrot.lane.b32.xlu0 %v78, 24
    %v80 = vpop.permute.xlu0 %79
    %vm81 = vcmask 261312
    %82 = vst.msk [vmem:[#allocation0] sm:$0x1] %vm81, %v80
    %s83 = scalar_lea.vmem %s0, 2
    %v84 = vld [vmem:[%s83] sm:$0x1]
    %85 = vrot.lane.b32.xlu0 %v84, 16
    %v86 = vpop.permute.xlu0 %85
    %vm87 = vcmask 195712
    %88 = vst.msk [vmem:[#allocation0] sm:$0x1] %vm87, %v86
    %s89 = scalar_lea.vmem %s0, 1
    %v90 = vld [vmem:[%s89] sm:$0x1]
    %91 = vrot.lane.b32.xlu0 %v90, 8
    %v92 = vpop.permute.xlu0 %91
    %vm93 = vcmask 130112
    %94 = vst.msk [vmem:[#allocation0] sm:$0x1] %vm93, %v92
    %s96 = sshllo.u32 0, 1
    %v98 = vld [vmem:[#allocation0] sm:%s96]
    %s99 = sshllo.u32 0, 1
    %100 = vst [vmem:[%s1] sm:%s99] %v98

// kernel: inconv_forward.1
$region0: #{inconv_forward.1}
  #allocation0 [shape = 'u32[]', space=smem, size = 0x4, offset = 0x4, fixed_abs, tag = 'smem constant byte address 0x4 - core index']
  #allocation1 [shape = 'u32[144,128]{1,0:T(1,128)}', space=vmem, size = 0x12000, scoped, tag = 'internal scratch']
  %s0 = inlined_call_operand.vmem [shape: f32[32,64], index: 0, kind: input, shape index: {}]
  %s1 = inlined_call_operand.vmem [shape: bf16[3,64,128], index: 1, kind: input, shape index: {}]
  %s2 = inlined_call_operand.vmem [shape: f32[1,128], index: 2, kind: input, shape index: {}]
  %s3 = inlined_call_operand.vmem [shape: f32[1,128], index: 3, kind: input, shape index: {}]
  %s4 = inlined_call_operand.vmem [shape: bf16[3,128,128], index: 4, kind: input, shape index: {}]
  %s5 = inlined_call_operand.vmem [shape: f32[1,128], index: 5, kind: input, shape index: {}]
  %s6 = inlined_call_operand.vmem [shape: f32[1,128], index: 6, kind: input, shape index: {}]
  %s7 = inlined_call_operand.vmem [shape: f32[32,128], index: 7, kind: output, shape index: {}]
  %s8 = sld [smem:[#allocation0]]
  $region38: #{inconv_forward.1} parent=0
    _
  %s10 = ssub.s32 1, %s8
  %s11 = scalar_select 0, %s10, %s8
  // Predicated region
  $region2: #{inconv_forward.1} parent=0 // pred_check
    _
  $region3: #{inconv_forward.1} parent=0 // pred_check_branch
    %13 = sbr.rel (0) target = $region5
  $region4: #{inconv_forward.1} parent=0 // pred_region
    _
  $region5: #{inconv_forward.1} parent=0 // pred_fallthru
    _
  // Predicated region
  $region6: #{inconv_forward.1} parent=0 // pred_check
    _
  $region7: #{inconv_forward.1} parent=0 // pred_check_branch
    %15 = sbr.rel (0) target = $region9
  $region8: #{inconv_forward.1} parent=0 // pred_region
    _
  $region9: #{inconv_forward.1} parent=0 // pred_fallthru
    _
  // Predicated region
  $region10: #{inconv_forward.1} parent=0 // pred_check
    _
  $region11: #{inconv_forward.1} parent=0 // pred_check_branch
    %17 = sbr.rel (0) target = $region13
  $region12: #{inconv_forward.1} parent=0 // pred_region
    _
  $region13: #{inconv_forward.1} parent=0 // pred_fallthru
    _
  // Predicated region
  $region14: #{inconv_forward.1} parent=0 // pred_check
    _
  $region15: #{inconv_forward.1} parent=0 // pred_check_branch
    %19 = sbr.rel (0) target = $region17
  $region16: #{inconv_forward.1} parent=0 // pred_region
    _
  $region17: #{inconv_forward.1} parent=0 // pred_fallthru
    _
  // Predicated region
  $region18: #{inconv_forward.1} parent=0 // pred_check
    _
  $region19: #{inconv_forward.1} parent=0 // pred_check_branch
    %21 = sbr.rel (0) target = $region21
  $region20: #{inconv_forward.1} parent=0 // pred_region
    _
  $region21: #{inconv_forward.1} parent=0 // pred_fallthru
    _
  // Predicated region
  $region22: #{inconv_forward.1} parent=0 // pred_check
    _
  $region23: #{inconv_forward.1} parent=0 // pred_check_branch
    %23 = sbr.rel (0) target = $region25
  $region24: #{inconv_forward.1} parent=0 // pred_region
    _
  $region25: #{inconv_forward.1} parent=0 // pred_fallthru
    _
  // Predicated region
  $region26: #{inconv_forward.1} parent=0 // pred_check
    _
  $region27: #{inconv_forward.1} parent=0 // pred_check_branch
    %25 = sbr.rel (0) target = $region29
  $region28: #{inconv_forward.1} parent=0 // pred_region
    _
  $region29: #{inconv_forward.1} parent=0 // pred_fallthru
    _
  %v27 = vlaneseq
  %v28 = vshrl.u32 %v27, 7
  %v29 = vadd.s32 %v28, 8
  %v30 = vadd.s32 %v28, 16
  %v31 = vadd.s32 %v28, 24
  %vm32 = vcmp.lt.s32.totalorder %v28, 0
  %v33 = vsub.s32 0, %v28
  %v34 = vsel %vm32, %v33, %v28
  %v35 = vshrl.u32 %v34, 4
  %v36 = vand.u32 %v34, 15
  %v37 = vsub.s32 0, %v36
  %v38 = vsel %vm32, %v37, %v36
  %vm39 = vcmp.lt.s32.totalorder %v29, 0
  %v40 = vsub.s32 0, %v29
  %v41 = vsel %vm39, %v40, %v29
  %v42 = vshrl.u32 %v41, 4
  %v43 = vand.u32 %v41, 15
  %v44 = vsub.s32 0, %v43
  %v45 = vsel %vm39, %v44, %v43
  %vm46 = vcmp.lt.s32.totalorder %v30, 0
  %v47 = vsub.s32 0, %v30
  %v48 = vsel %vm46, %v47, %v30
  %v49 = vshrl.u32 %v48, 4
  %v50 = vand.u32 %v48, 15
  %v51 = vsub.s32 0, %v50
  %v52 = vsel %vm46, %v51, %v50
  %vm53 = vcmp.lt.s32.totalorder %v31, 0
  %v54 = vsub.s32 0, %v31
  %v55 = vsel %vm53, %v54, %v31
  %v56 = vshrl.u32 %v55, 4
  %v57 = vand.u32 %v55, 15
  %v58 = vsub.s32 0, %v57
  %v59 = vsel %vm53, %v58, %v57
  %vm60 = vcmp.ne.s32.totalorder %v38, 0
  %vm61 = vcmp.ne.s32.totalorder %v45, 0
  %vm62 = vcmp.ne.s32.totalorder %v52, 0
  %vm63 = vcmp.ne.s32.totalorder %v59, 0
  %vm64 = vcmp.lt.s32.totalorder %v38, 0
  %vm65 = vcmp.lt.s32.totalorder %v45, 0
  %vm66 = vcmp.lt.s32.totalorder %v52, 0
  %vm67 = vcmp.lt.s32.totalorder %v59, 0
  %vm68 = vmand %vm64, %vm60
  %vm69 = vmand %vm65, %vm61
  %vm70 = vmand %vm66, %vm62
  %vm71 = vmand %vm67, %vm63
  %v72 = vadd.s32 %v38, 16
  %v73 = vadd.s32 %v45, 16
  %v74 = vadd.s32 %v52, 16
  %v75 = vadd.s32 %v59, 16
  %v76 = vsel %vm68, %v72, %v38
  %v77 = vsel %vm69, %v73, %v45
  %v78 = vsel %vm70, %v74, %v52
  %v79 = vsel %vm71, %v75, %v59
  %vm80 = vcmp.eq.s32.totalorder %v76, 0
  %vm81 = vcmp.eq.s32.totalorder %v77, 0
  %vm82 = vcmp.eq.s32.totalorder %v78, 0
  %vm83 = vcmp.eq.s32.totalorder %v79, 0
  %vm84 = vcmp.eq.s32.totalorder %v76, 15
  %vm85 = vcmp.eq.s32.totalorder %v77, 15
  %vm86 = vcmp.eq.s32.totalorder %v78, 15
  %vm87 = vcmp.eq.s32.totalorder %v79, 15
  %v88 = vld [vmem:[%s0] sm:$0xff]
  %v89 = vld [vmem:[%s0 + $0x8] sm:$0xff]
  %v90 = vld [vmem:[%s0 + $0x10] sm:$0xff]
  %v91 = vld [vmem:[%s0 + $0x18] sm:$0xff]
  %v92 = vrot.slane %v88, 7
  %v93 = vrot.slane %v89, 7
  %v94 = vrot.slane %v90, 7
  %v95 = vrot.slane %v91, 7
  %vm96 = vcmp.lt.s32.totalorder %v28, 1
  %v97 = vsel %vm96, %v94, %v95
  %v98 = vsel %vm96, %v93, %v94
  %v99 = vsel %vm96, %v92, %v93
  %v100 = vsel %vm96, %v95, %v92
  %v101 = vsel %vm80, 1, 0
  %v102 = vsel %vm81, 1, 0
  %v103 = vsel %vm82, 1, 0
  %v104 = vsel %vm83, 1, 0
  %vm105 = vcmp.eq.s32.totalorder %v101, 1
  %vm106 = vcmp.eq.s32.totalorder %v102, 1
  %vm107 = vcmp.eq.s32.totalorder %v103, 1
  %vm108 = vcmp.eq.s32.totalorder %v104, 1
  %v109 = vsel %vm105, 0.0, %v100
  %v110 = vsel %vm106, 0.0, %v99
  %v111 = vsel %vm107, 0.0, %v98
  %v112 = vsel %vm108, 0.0, %v97
  %v113 = vrot.slane %v88, 1
  %v114 = vrot.slane %v89, 1
  %v115 = vrot.slane %v90, 1
  %v116 = vrot.slane %v91, 1
  %vm117 = vcmp.lt.s32.totalorder %v28, 7
  %v118 = vsel %vm117, %v115, %v116
  %v119 = vsel %vm117, %v114, %v115
  %v120 = vsel %vm117, %v113, %v114
  %v121 = vsel %vm117, %v116, %v113
  %v122 = vsel %vm84, 1, 0
  %v123 = vsel %vm85, 1, 0
  %v124 = vsel %vm86, 1, 0
  %v125 = vsel %vm87, 1, 0
  %vm126 = vcmp.eq.s32.totalorder %v122, 1
  %vm127 = vcmp.eq.s32.totalorder %v123, 1
  %vm128 = vcmp.eq.s32.totalorder %v124, 1
  %vm129 = vcmp.eq.s32.totalorder %v125, 1
  %v130 = vsel %vm126, 0.0, %v120
  %v131 = vsel %vm127, 0.0, %v119
  %v132 = vsel %vm128, 0.0, %v118
  %v133 = vsel %vm129, 0.0, %v121
  %v134 = vpack.c.bf16 %v110, %v109
  %v135 = vpack.c.bf16 %v112, %v111
  %v136 = vld [vmem:[%s1] sm:$0xf]
  %v137 = vld [vmem:[%s1 + $0x4] sm:$0xf]
  %v138 = vld [vmem:[%s1 + $0x8] sm:$0xf]
  %v139 = vld [vmem:[%s1 + $0xc] sm:$0xf]
  %v140 = vld [vmem:[%s1 + $0x10] sm:$0xf]
  %v141 = vld [vmem:[%s1 + $0x14] sm:$0xf]
  %v142 = vld [vmem:[%s1 + $0x18] sm:$0xf]
  %v143 = vld [vmem:[%s1 + $0x1c] sm:$0xf]
  %v144 = vpack.c.bf16 %v89, %v88
  %v145 = vpack.c.bf16 %v91, %v90
  %s146 = scalar_lea.vmem %s1, 32
  %v147 = vld [vmem:[%s146] sm:$0xf]
  %v148 = vld [vmem:[%s146 + $0x4] sm:$0xf]
  %v149 = vld [vmem:[%s146 + $0x8] sm:$0xf]
  %v150 = vld [vmem:[%s146 + $0xc] sm:$0xf]
  %v151 = vld [vmem:[%s146 + $0x10] sm:$0xf]
  %v152 = vld [vmem:[%s146 + $0x14] sm:$0xf]
  %v153 = vld [vmem:[%s146 + $0x18] sm:$0xf]
  %v154 = vld [vmem:[%s146 + $0x1c] sm:$0xf]
  %v163 = vunpack.c.l.b16 %v147
  %v164 = vunpack.c.l.b16 %v148
  %v165 = vunpack.c.l.b16 %v149
  %v166 = vunpack.c.l.b16 %v150
  %v167 = vunpack.c.l.b16 %v151
  %v168 = vunpack.c.l.b16 %v152
  %v169 = vunpack.c.l.b16 %v153
  %v170 = vunpack.c.l.b16 %v154
  %v171 = vpack.c.b16 %v164, %v163
  %v172 = vpack.c.b16 %v166, %v165
  %v173 = vpack.c.b16 %v168, %v167
  %v174 = vpack.c.b16 %v170, %v169
  %vm179 = vcmask 523264
  %v181 = vsel %vm179, %v144, 0
  %v184 = vsel %vm179, %v145, 0
  %186 = vmatprep.subr.bf16.mxu0 0
  %187 = vmatpush1.bf16.msra.mxu0 %v171
  %188 = vmatprep.subr.bf16.mxu0 0
  %189 = vmatpush1.bf16.msra.mxu0 %v172
  %190 = vmatprep.subr.bf16.mxu0 0
  %191 = vmatpush1.bf16.msra.mxu0 %v173
  %192 = vmatprep.subr.bf16.mxu0 0
  %193 = vmatpush1.bf16.msra.mxu0 %v174
  %194 = vmatprep.subr.bf16.mxu0 0
  %195 = vmatpush1.bf16.msra.mxu0 0
  %196 = vmatprep.subr.bf16.mxu0 0
  %197 = vmatpush1.bf16.msra.mxu0 0
  %198 = vmatprep.subr.bf16.mxu0 0
  %199 = vmatpush1.bf16.msra.mxu0 0
  %200 = vmatprep.subr.bf16.mxu0 0
  %201 = vmatpush1.bf16.msra.mxu0 0
  %202 = vmatprep.subr.bf16.mxu0 0
  %203 = vmatpush1.bf16.msra.mxu0 0
  %204 = vmatprep.subr.bf16.mxu0 0
  %205 = vmatpush1.bf16.msra.mxu0 0
  %206 = vmatprep.subr.bf16.mxu0 0
  %207 = vmatpush1.bf16.msra.mxu0 0
  %208 = vmatprep.subr.bf16.mxu0 0
  %209 = vmatpush1.bf16.msra.mxu0 0
  %210 = vmatprep.subr.bf16.mxu0 0
  %211 = vmatpush1.bf16.msra.mxu0 0
  %212 = vmatprep.subr.bf16.mxu0 0
  %213 = vmatpush1.bf16.msra.mxu0 0
  %214 = vmatprep.subr.bf16.mxu0 0
  %215 = vmatpush1.bf16.msra.mxu0 0
  %216 = vmatprep.subr.bf16.mxu0 0
  %217 = vmatpush1.bf16.msra.mxu0 0
  %218 = vmatprep.mubr.bf16.mxu0 0
  %219 = vmatmul.mubr.bf16.gmra.mrb[0].mxu0 %v181
  %v220 = vpop.f32.mrb[0].mxu0
  %v221 = vadd.f32 0.0, %v220
  %v222 = vpop.f32.mrb[0].mxu0
  %v223 = vpop.f32.mrb[0].mxu0
  %v224 = vadd.f32 0.0, %v223
  %v225 = vpop.f32.mrb[0].mxu0
  %226 = vmatprep.mubr.bf16.mxu0 0
  %227 = vmatmul.mubr.bf16.gmra.mrb[0].mxu0 %v184
  %v228 = vpop.f32.mrb[0].mxu0
  %v229 = vadd.f32 0.0, %v228
  %v230 = vpop.f32.mrb[0].mxu0
  %v231 = vpop.f32.mrb[0].mxu0
  %v232 = vadd.f32 0.0, %v231
  %v233 = vpop.f32.mrb[0].mxu0
  %234 = vdwg.mxu0
  %v243 = vunpack.c.l.b16 %v136
  %v244 = vunpack.c.l.b16 %v137
  %v245 = vunpack.c.l.b16 %v138
  %v246 = vunpack.c.l.b16 %v139
  %v247 = vunpack.c.l.b16 %v140
  %v248 = vunpack.c.l.b16 %v141
  %v249 = vunpack.c.l.b16 %v142
  %v250 = vunpack.c.l.b16 %v143
  %v251 = vpack.c.b16 %v244, %v243
  %v252 = vpack.c.b16 %v246, %v245
  %v253 = vpack.c.b16 %v248, %v247
  %v254 = vpack.c.b16 %v250, %v249
  %v260 = vsel %vm179, %v134, 0
  %v263 = vsel %vm179, %v135, 0
  %265 = vmatprep.subr.bf16.mxu0 0
  %266 = vmatpush1.bf16.msra.mxu0 %v251
  %267 = vmatprep.subr.bf16.mxu0 0
  %268 = vmatpush1.bf16.msra.mxu0 %v252
  %269 = vmatprep.subr.bf16.mxu0 0
  %270 = vmatpush1.bf16.msra.mxu0 %v253
  %271 = vmatprep.subr.bf16.mxu0 0
  %272 = vmatpush1.bf16.msra.mxu0 %v254
  %273 = vmatprep.subr.bf16.mxu0 0
  %274 = vmatpush1.bf16.msra.mxu0 0
  %275 = vmatprep.subr.bf16.mxu0 0
  %276 = vmatpush1.bf16.msra.mxu0 0
  %277 = vmatprep.subr.bf16.mxu0 0
  %278 = vmatpush1.bf16.msra.mxu0 0
  %279 = vmatprep.subr.bf16.mxu0 0
  %280 = vmatpush1.bf16.msra.mxu0 0
  %281 = vmatprep.subr.bf16.mxu0 0
  %282 = vmatpush1.bf16.msra.mxu0 0
  %283 = vmatprep.subr.bf16.mxu0 0
  %284 = vmatpush1.bf16.msra.mxu0 0
  %285 = vmatprep.subr.bf16.mxu0 0
  %286 = vmatpush1.bf16.msra.mxu0 0
  %287 = vmatprep.subr.bf16.mxu0 0
  %288 = vmatpush1.bf16.msra.mxu0 0
  %289 = vmatprep.subr.bf16.mxu0 0
  %290 = vmatpush1.bf16.msra.mxu0 0
  %291 = vmatprep.subr.bf16.mxu0 0
  %292 = vmatpush1.bf16.msra.mxu0 0
  %293 = vmatprep.subr.bf16.mxu0 0
  %294 = vmatpush1.bf16.msra.mxu0 0
  %295 = vmatprep.subr.bf16.mxu0 0
  %296 = vmatpush1.bf16.msra.mxu0 0
  %297 = vmatprep.mubr.bf16.mxu0 0
  %298 = vmatmul.mubr.bf16.gmra.mrb[0].mxu0 %v260
  %v299 = vpop.f32.mrb[0].mxu0
  %v300 = vadd.f32 %v221, %v299
  %v301 = vpop.f32.mrb[0].mxu0
  %v302 = vpop.f32.mrb[0].mxu0
  %v303 = vadd.f32 %v224, %v302
  %v304 = vpop.f32.mrb[0].mxu0
  %305 = vmatprep.mubr.bf16.mxu0 0
  %306 = vmatmul.mubr.bf16.gmra.mrb[0].mxu0 %v263
  %v307 = vpop.f32.mrb[0].mxu0
  %v308 = vadd.f32 %v229, %v307
  %v309 = vpop.f32.mrb[0].mxu0
  %v310 = vpop.f32.mrb[0].mxu0
  %v311 = vadd.f32 %v232, %v310
  %v312 = vpop.f32.mrb[0].mxu0
  %313 = vdwg.mxu0
  %v314 = vpack.c.bf16 %v131, %v130
  %v315 = vpack.c.bf16 %v133, %v132
  %s316 = scalar_lea.vmem %s1, 64
  %v317 = vld [vmem:[%s316] sm:$0xf]
  %v318 = vld [vmem:[%s316 + $0x4] sm:$0xf]
  %v319 = vld [vmem:[%s316 + $0x8] sm:$0xf]
  %v320 = vld [vmem:[%s316 + $0xc] sm:$0xf]
  %v321 = vld [vmem:[%s316 + $0x10] sm:$0xf]
  %v322 = vld [vmem:[%s316 + $0x14] sm:$0xf]
  %v323 = vld [vmem:[%s316 + $0x18] sm:$0xf]
  %v324 = vld [vmem:[%s316 + $0x1c] sm:$0xf]
  %v333 = vunpack.c.l.b16 %v317
  %v334 = vunpack.c.l.b16 %v318
  %v335 = vunpack.c.l.b16 %v319
  %v336 = vunpack.c.l.b16 %v320
  %v337 = vunpack.c.l.b16 %v321
  %v338 = vunpack.c.l.b16 %v322
  %v339 = vunpack.c.l.b16 %v323
  %v340 = vunpack.c.l.b16 %v324
  %v341 = vpack.c.b16 %v334, %v333
  %v342 = vpack.c.b16 %v336, %v335
  %v343 = vpack.c.b16 %v338, %v337
  %v344 = vpack.c.b16 %v340, %v339
  %v350 = vsel %vm179, %v314, 0
  %v353 = vsel %vm179, %v315, 0
  %355 = vmatprep.subr.bf16.mxu0 0
  %356 = vmatpush1.bf16.msra.mxu0 %v341
  %357 = vmatprep.subr.bf16.mxu0 0
  %358 = vmatpush1.bf16.msra.mxu0 %v342
  %359 = vmatprep.subr.bf16.mxu0 0
  %360 = vmatpush1.bf16.msra.mxu0 %v343
  %361 = vmatprep.subr.bf16.mxu0 0
  %362 = vmatpush1.bf16.msra.mxu0 %v344
  %363 = vmatprep.subr.bf16.mxu0 0
  %364 = vmatpush1.bf16.msra.mxu0 0
  %365 = vmatprep.subr.bf16.mxu0 0
  %366 = vmatpush1.bf16.msra.mxu0 0
  %367 = vmatprep.subr.bf16.mxu0 0
  %368 = vmatpush1.bf16.msra.mxu0 0
  %369 = vmatprep.subr.bf16.mxu0 0
  %370 = vmatpush1.bf16.msra.mxu0 0
  %371 = vmatprep.subr.bf16.mxu0 0
  %372 = vmatpush1.bf16.msra.mxu0 0
  %373 = vmatprep.subr.bf16.mxu0 0
  %374 = vmatpush1.bf16.msra.mxu0 0
  %375 = vmatprep.subr.bf16.mxu0 0
  %376 = vmatpush1.bf16.msra.mxu0 0
  %377 = vmatprep.subr.bf16.mxu0 0
  %378 = vmatpush1.bf16.msra.mxu0 0
  %379 = vmatprep.subr.bf16.mxu0 0
  %380 = vmatpush1.bf16.msra.mxu0 0
  %381 = vmatprep.subr.bf16.mxu0 0
  %382 = vmatpush1.bf16.msra.mxu0 0
  %383 = vmatprep.subr.bf16.mxu0 0
  %384 = vmatpush1.bf16.msra.mxu0 0
  %385 = vmatprep.subr.bf16.mxu0 0
  %386 = vmatpush1.bf16.msra.mxu0 0
  %387 = vmatprep.mubr.bf16.mxu0 0
  %388 = vmatmul.mubr.bf16.gmra.mrb[0].mxu0 %v350
  %v389 = vpop.f32.mrb[0].mxu0
  %v390 = vadd.f32 0.0, %v389
  %v391 = vpop.f32.mrb[0].mxu0
  %v392 = vpop.f32.mrb[0].mxu0
  %v393 = vadd.f32 0.0, %v392
  %v394 = vpop.f32.mrb[0].mxu0
  %395 = vmatprep.mubr.bf16.mxu0 0
  %396 = vmatmul.mubr.bf16.gmra.mrb[0].mxu0 %v353
  %v397 = vpop.f32.mrb[0].mxu0
  %v398 = vadd.f32 0.0, %v397
  %v399 = vpop.f32.mrb[0].mxu0
  %v400 = vpop.f32.mrb[0].mxu0
  %v401 = vadd.f32 0.0, %v400
  %v402 = vpop.f32.mrb[0].mxu0
  %403 = vdwg.mxu0
  %v404 = vadd.f32 %v300, %v390
  %v405 = vadd.f32 %v303, %v393
  %v406 = vadd.f32 %v308, %v398
  %v407 = vadd.f32 %v311, %v401
  %v408 = vadd.f32 %v404, %v405
  %v409 = vadd.f32 %v408, %v406
  %v410 = vadd.f32 %v409, %v407
  %v411 = vrot.slane %v410, 4
  %v412 = vadd.f32 %v410, %v411
  %v413 = vrot.slane %v412, 2
  %v414 = vadd.f32 %v412, %v413
  %v415 = vrot.slane %v414, 1
  %v416 = vadd.f32 %v414, %v415
  %417 = vrot.lane.b32.xlu0 %v416, 8
  %v418 = vpop.permute.xlu0 %417
  %v419 = vadd.f32 %v416, %v418
  %420 = vrot.lane.b32.xlu0 %v419, 16
  %v421 = vpop.permute.xlu0 %420
  %v422 = vadd.f32 %v419, %v421
  %423 = vrot.lane.b32.xlu0 %v422, 32
  %v424 = vpop.permute.xlu0 %423
  %v425 = vadd.f32 %v422, %v424
  %426 = vrot.lane.b32.xlu0 %v425, 64
  %v427 = vpop.permute.xlu0 %426
  %v428 = vadd.f32 %v425, %v427
  %v429 = vmul.f32 %v404, %v404
  %v430 = vmul.f32 %v405, %v405
  %v431 = vmul.f32 %v406, %v406
  %v432 = vmul.f32 %v407, %v407
  %v433 = vadd.f32 %v429, %v430
  %v434 = vadd.f32 %v433, %v431
  %v435 = vadd.f32 %v434, %v432
  %v436 = vrot.slane %v435, 4
  %v437 = vadd.f32 %v435, %v436
  %v438 = vrot.slane %v437, 2
  %v439 = vadd.f32 %v437, %v438
  %v440 = vrot.slane %v439, 1
  %v441 = vadd.f32 %v439, %v440
  %442 = vrot.lane.b32.xlu0 %v441, 8
  %v443 = vpop.permute.xlu0 %442
  %v444 = vadd.f32 %v441, %v443
  %445 = vrot.lane.b32.xlu0 %v444, 16
  %v446 = vpop.permute.xlu0 %445
  %v447 = vadd.f32 %v444, %v446
  %448 = vrot.lane.b32.xlu0 %v447, 32
  %v449 = vpop.permute.xlu0 %448
  %v450 = vadd.f32 %v447, %v449
  %451 = vrot.lane.b32.xlu0 %v450, 64
  %v452 = vpop.permute.xlu0 %451
  %v453 = vadd.f32 %v450, %v452
  %v454 = vmul.f32 %v428, 0.001953125
  %v455 = vmul.f32 %v453, 0.001953125
  %v456 = vmul.f32 %v454, %v454
  %v457 = vsub.f32 %v455, %v456
  %v458 = vmax.f32 %v457, 0.0
  %v459 = vld [vmem:[%s2] sm:$0x1]
  %v460 = vadd.f32 %v458, 1e-05
  %v461 = vrsqrt.pop %v460
  %v462 = vmul.f32 %v459, %v461
  %v463 = vld [vmem:[%s3] sm:$0x1]
  %v464 = vmul.f32 %v454, %v462
  %v465 = vsub.f32 %v463, %v464
  %v467 = vlaneseq
  %v468 = vshrl.u32 %v467, 7
  %v469 = vsub.s32 0, %v468
  %v470 = vrot.slane %v462, %v469
  %v472 = vmul.f32 %v404, %v470
  %v473 = vmul.f32 %v405, %v470
  %v474 = vmul.f32 %v406, %v470
  %v475 = vmul.f32 %v407, %v470
  %v477 = vlaneseq
  %v478 = vshrl.u32 %v477, 7
  %v479 = vsub.s32 0, %v478
  %v480 = vrot.slane %v465, %v479
  %v482 = vadd.f32 %v472, %v480
  %v483 = vadd.f32 %v473, %v480
  %v484 = vadd.f32 %v474, %v480
  %v485 = vadd.f32 %v475, %v480
  %v486 = vmax.f32 %v482, 0.0
  %v487 = vmax.f32 %v483, 0.0
  %v488 = vmax.f32 %v484, 0.0
  %v489 = vmax.f32 %v485, 0.0
  %v490 = vrot.slane %v486, 7
  %v491 = vrot.slane %v487, 7
  %v492 = vrot.slane %v488, 7
  %v493 = vrot.slane %v489, 7
  %v494 = vsel %vm96, %v492, %v493
  %v495 = vsel %vm96, %v491, %v492
  %v496 = vsel %vm96, %v490, %v491
  %v497 = vsel %vm96, %v493, %v490
  %v498 = vsel %vm105, 0.0, %v497
  %v499 = vsel %vm106, 0.0, %v496
  %v500 = vsel %vm107, 0.0, %v495
  %v501 = vsel %vm108, 0.0, %v494
  %v502 = vrot.slane %v486, 1
  %v503 = vrot.slane %v487, 1
  %v504 = vrot.slane %v488, 1
  %v505 = vrot.slane %v489, 1
  %v506 = vsel %vm117, %v504, %v505
  %v507 = vsel %vm117, %v503, %v504
  %v508 = vsel %vm117, %v502, %v503
  %v509 = vsel %vm117, %v505, %v502
  %v510 = vsel %vm126, 0.0, %v508
  %v511 = vsel %vm127, 0.0, %v507
  %v512 = vsel %vm128, 0.0, %v506
  %v513 = vsel %vm129, 0.0, %v509
  %v514 = vpack.c.bf16 %v499, %v498
  %v515 = vpack.c.bf16 %v501, %v500
  %v516 = vld [vmem:[%s4] sm:$0xf]
  %v517 = vld [vmem:[%s4 + $0x4] sm:$0xf]
  %v518 = vld [vmem:[%s4 + $0x8] sm:$0xf]
  %v519 = vld [vmem:[%s4 + $0xc] sm:$0xf]
  %v520 = vld [vmem:[%s4 + $0x10] sm:$0xf]
  %v521 = vld [vmem:[%s4 + $0x14] sm:$0xf]
  %v522 = vld [vmem:[%s4 + $0x18] sm:$0xf]
  %v523 = vld [vmem:[%s4 + $0x1c] sm:$0xf]
  %v524 = vld [vmem:[%s4 + $0x20] sm:$0xf]
  %v525 = vld [vmem:[%s4 + $0x24] sm:$0xf]
  %v526 = vld [vmem:[%s4 + $0x28] sm:$0xf]
  %v527 = vld [vmem:[%s4 + $0x2c] sm:$0xf]
  %v528 = vld [vmem:[%s4 + $0x30] sm:$0xf]
  %v529 = vld [vmem:[%s4 + $0x34] sm:$0xf]
  %v530 = vld [vmem:[%s4 + $0x38] sm:$0xf]
  %v531 = vld [vmem:[%s4 + $0x3c] sm:$0xf]
  %v532 = vpack.c.bf16 %v487, %v486
  %v533 = vpack.c.bf16 %v489, %v488
  %s534 = scalar_lea.vmem %s4, 64
  %v535 = vld [vmem:[%s534] sm:$0xf]
  %v536 = vld [vmem:[%s534 + $0x4] sm:$0xf]
  %v537 = vld [vmem:[%s534 + $0x8] sm:$0xf]
  %v538 = vld [vmem:[%s534 + $0xc] sm:$0xf]
  %v539 = vld [vmem:[%s534 + $0x10] sm:$0xf]
  %v540 = vld [vmem:[%s534 + $0x14] sm:$0xf]
  %v541 = vld [vmem:[%s534 + $0x18] sm:$0xf]
  %v542 = vld [vmem:[%s534 + $0x1c] sm:$0xf]
  %v543 = vld [vmem:[%s534 + $0x20] sm:$0xf]
  %v544 = vld [vmem:[%s534 + $0x24] sm:$0xf]
  %v545 = vld [vmem:[%s534 + $0x28] sm:$0xf]
  %v546 = vld [vmem:[%s534 + $0x2c] sm:$0xf]
  %v547 = vld [vmem:[%s534 + $0x30] sm:$0xf]
  %v548 = vld [vmem:[%s534 + $0x34] sm:$0xf]
  %v549 = vld [vmem:[%s534 + $0x38] sm:$0xf]
  %v550 = vld [vmem:[%s534 + $0x3c] sm:$0xf]
  %v567 = vunpack.c.l.b16 %v535
  %v568 = vunpack.c.l.b16 %v536
  %v569 = vunpack.c.l.b16 %v537
  %v570 = vunpack.c.l.b16 %v538
  %v571 = vunpack.c.l.b16 %v539
  %v572 = vunpack.c.l.b16 %v540
  %v573 = vunpack.c.l.b16 %v541
  %v574 = vunpack.c.l.b16 %v542
  %v575 = vunpack.c.l.b16 %v543
  %v576 = vunpack.c.l.b16 %v544
  %v577 = vunpack.c.l.b16 %v545
  %v578 = vunpack.c.l.b16 %v546
  %v579 = vunpack.c.l.b16 %v547
  %v580 = vunpack.c.l.b16 %v548
  %v581 = vunpack.c.l.b16 %v549
  %v582 = vunpack.c.l.b16 %v550
  %v583 = vpack.c.b16 %v568, %v567
  %v584 = vpack.c.b16 %v570, %v569
  %v585 = vpack.c.b16 %v572, %v571
  %v586 = vpack.c.b16 %v574, %v573
  %v587 = vpack.c.b16 %v576, %v575
  %v588 = vpack.c.b16 %v578, %v577
  %v589 = vpack.c.b16 %v580, %v579
  %v590 = vpack.c.b16 %v582, %v581
  %599 = vmatprep.subr.bf16.mxu0 0
  %600 = vmatpush1.bf16.msra.mxu0 %v583
  %601 = vmatprep.subr.bf16.mxu0 0
  %602 = vmatpush1.bf16.msra.mxu0 %v584
  %603 = vmatprep.subr.bf16.mxu0 0
  %604 = vmatpush1.bf16.msra.mxu0 %v585
  %605 = vmatprep.subr.bf16.mxu0 0
  %606 = vmatpush1.bf16.msra.mxu0 %v586
  %607 = vmatprep.subr.bf16.mxu0 0
  %608 = vmatpush1.bf16.msra.mxu0 %v587
  %609 = vmatprep.subr.bf16.mxu0 0
  %610 = vmatpush1.bf16.msra.mxu0 %v588
  %611 = vmatprep.subr.bf16.mxu0 0
  %612 = vmatpush1.bf16.msra.mxu0 %v589
  %613 = vmatprep.subr.bf16.mxu0 0
  %614 = vmatpush1.bf16.msra.mxu0 %v590
  %615 = vmatprep.subr.bf16.mxu0 0
  %616 = vmatpush1.bf16.msra.mxu0 0
  %617 = vmatprep.subr.bf16.mxu0 0
  %618 = vmatpush1.bf16.msra.mxu0 0
  %619 = vmatprep.subr.bf16.mxu0 0
  %620 = vmatpush1.bf16.msra.mxu0 0
  %621 = vmatprep.subr.bf16.mxu0 0
  %622 = vmatpush1.bf16.msra.mxu0 0
  %623 = vmatprep.subr.bf16.mxu0 0
  %624 = vmatpush1.bf16.msra.mxu0 0
  %625 = vmatprep.subr.bf16.mxu0 0
  %626 = vmatpush1.bf16.msra.mxu0 0
  %627 = vmatprep.subr.bf16.mxu0 0
  %628 = vmatpush1.bf16.msra.mxu0 0
  %629 = vmatprep.subr.bf16.mxu0 0
  %630 = vmatpush1.bf16.msra.mxu0 0
  %631 = vmatprep.mubr.bf16.mxu0 0
  %632 = vmatmul.mubr.bf16.gmra.mrb[0].mxu0 %v532
  %v633 = vpop.f32.mrb[0].mxu0
  %v634 = vadd.f32 0.0, %v633
  %v635 = vpop.f32.mrb[0].mxu0
  %v636 = vpop.f32.mrb[0].mxu0
  %v637 = vadd.f32 0.0, %v636
  %v638 = vpop.f32.mrb[0].mxu0
  %639 = vmatprep.mubr.bf16.mxu0 0
  %640 = vmatmul.mubr.bf16.gmra.mrb[0].mxu0 %v533
  %v641 = vpop.f32.mrb[0].mxu0
  %v642 = vadd.f32 0.0, %v641
  %v643 = vpop.f32.mrb[0].mxu0
  %v644 = vpop.f32.mrb[0].mxu0
  %v645 = vadd.f32 0.0, %v644
  %v646 = vpop.f32.mrb[0].mxu0
  %647 = vdwg.mxu0
  %v664 = vunpack.c.l.b16 %v516
  %v665 = vunpack.c.l.b16 %v517
  %v666 = vunpack.c.l.b16 %v518
  %v667 = vunpack.c.l.b16 %v519
  %v668 = vunpack.c.l.b16 %v520
  %v669 = vunpack.c.l.b16 %v521
  %v670 = vunpack.c.l.b16 %v522
  %v671 = vunpack.c.l.b16 %v523
  %v672 = vunpack.c.l.b16 %v524
  %v673 = vunpack.c.l.b16 %v525
  %v674 = vunpack.c.l.b16 %v526
  %v675 = vunpack.c.l.b16 %v527
  %v676 = vunpack.c.l.b16 %v528
  %v677 = vunpack.c.l.b16 %v529
  %v678 = vunpack.c.l.b16 %v530
  %v679 = vunpack.c.l.b16 %v531
  %v680 = vpack.c.b16 %v665, %v664
  %v681 = vpack.c.b16 %v667, %v666
  %v682 = vpack.c.b16 %v669, %v668
  %v683 = vpack.c.b16 %v671, %v670
  %v684 = vpack.c.b16 %v673, %v672
  %v685 = vpack.c.b16 %v675, %v674
  %v686 = vpack.c.b16 %v677, %v676
  %v687 = vpack.c.b16 %v679, %v678
  %696 = vmatprep.subr.bf16.mxu0 0
  %697 = vmatpush1.bf16.msra.mxu0 %v680
  %698 = vmatprep.subr.bf16.mxu0 0
  %699 = vmatpush1.bf16.msra.mxu0 %v681
  %700 = vmatprep.subr.bf16.mxu0 0
  %701 = vmatpush1.bf16.msra.mxu0 %v682
  %702 = vmatprep.subr.bf16.mxu0 0
  %703 = vmatpush1.bf16.msra.mxu0 %v683
  %704 = vmatprep.subr.bf16.mxu0 0
  %705 = vmatpush1.bf16.msra.mxu0 %v684
  %706 = vmatprep.subr.bf16.mxu0 0
  %707 = vmatpush1.bf16.msra.mxu0 %v685
  %708 = vmatprep.subr.bf16.mxu0 0
  %709 = vmatpush1.bf16.msra.mxu0 %v686
  %710 = vmatprep.subr.bf16.mxu0 0
  %711 = vmatpush1.bf16.msra.mxu0 %v687
  %712 = vmatprep.subr.bf16.mxu0 0
  %713 = vmatpush1.bf16.msra.mxu0 0
  %714 = vmatprep.subr.bf16.mxu0 0
  %715 = vmatpush1.bf16.msra.mxu0 0
  %716 = vmatprep.subr.bf16.mxu0 0
  %717 = vmatpush1.bf16.msra.mxu0 0
  %718 = vmatprep.subr.bf16.mxu0 0
  %719 = vmatpush1.bf16.msra.mxu0 0
  %720 = vmatprep.subr.bf16.mxu0 0
  %721 = vmatpush1.bf16.msra.mxu0 0
  %722 = vmatprep.subr.bf16.mxu0 0
  %723 = vmatpush1.bf16.msra.mxu0 0
  %724 = vmatprep.subr.bf16.mxu0 0
  %725 = vmatpush1.bf16.msra.mxu0 0
  %726 = vmatprep.subr.bf16.mxu0 0
  %727 = vmatpush1.bf16.msra.mxu0 0
  %728 = vmatprep.mubr.bf16.mxu0 0
  %729 = vmatmul.mubr.bf16.gmra.mrb[0].mxu0 %v514
  %v730 = vpop.f32.mrb[0].mxu0
  %v731 = vadd.f32 %v634, %v730
  %v732 = vpop.f32.mrb[0].mxu0
  %v733 = vpop.f32.mrb[0].mxu0
  %v734 = vadd.f32 %v637, %v733
  %v735 = vpop.f32.mrb[0].mxu0
  %736 = vmatprep.mubr.bf16.mxu0 0
  %737 = vmatmul.mubr.bf16.gmra.mrb[0].mxu0 %v515
  %v738 = vpop.f32.mrb[0].mxu0
  %v739 = vadd.f32 %v642, %v738
  %v740 = vpop.f32.mrb[0].mxu0
  %v741 = vpop.f32.mrb[0].mxu0
  %v742 = vadd.f32 %v645, %v741
  %v743 = vpop.f32.mrb[0].mxu0
  %744 = vdwg.mxu0
  %v745 = vpack.c.bf16 %v511, %v510
  %v746 = vpack.c.bf16 %v513, %v512
  %s747 = scalar_lea.vmem %s4, 128
  %v748 = vld [vmem:[%s747] sm:$0xf]
  %v749 = vld [vmem:[%s747 + $0x4] sm:$0xf]
  %v750 = vld [vmem:[%s747 + $0x8] sm:$0xf]
  %v751 = vld [vmem:[%s747 + $0xc] sm:$0xf]
  %v752 = vld [vmem:[%s747 + $0x10] sm:$0xf]
  %v753 = vld [vmem:[%s747 + $0x14] sm:$0xf]
  %v754 = vld [vmem:[%s747 + $0x18] sm:$0xf]
  %v755 = vld [vmem:[%s747 + $0x1c] sm:$0xf]
  %v756 = vld [vmem:[%s747 + $0x20] sm:$0xf]
  %v757 = vld [vmem:[%s747 + $0x24] sm:$0xf]
  %v758 = vld [vmem:[%s747 + $0x28] sm:$0xf]
  %v759 = vld [vmem:[%s747 + $0x2c] sm:$0xf]
  %v760 = vld [vmem:[%s747 + $0x30] sm:$0xf]
  %v761 = vld [vmem:[%s747 + $0x34] sm:$0xf]
  %v762 = vld [vmem:[%s747 + $0x38] sm:$0xf]
  %v763 = vld [vmem:[%s747 + $0x3c] sm:$0xf]
  %v780 = vunpack.c.l.b16 %v748
  %v781 = vunpack.c.l.b16 %v749
  %v782 = vunpack.c.l.b16 %v750
  %v783 = vunpack.c.l.b16 %v751
  %v784 = vunpack.c.l.b16 %v752
  %v785 = vunpack.c.l.b16 %v753
  %v786 = vunpack.c.l.b16 %v754
  %v787 = vunpack.c.l.b16 %v755
  %v788 = vunpack.c.l.b16 %v756
  %v789 = vunpack.c.l.b16 %v757
  %v790 = vunpack.c.l.b16 %v758
  %v791 = vunpack.c.l.b16 %v759
  %v792 = vunpack.c.l.b16 %v760
  %v793 = vunpack.c.l.b16 %v761
  %v794 = vunpack.c.l.b16 %v762
  %v795 = vunpack.c.l.b16 %v763
  %v796 = vpack.c.b16 %v781, %v780
  %v797 = vpack.c.b16 %v783, %v782
  %v798 = vpack.c.b16 %v785, %v784
  %v799 = vpack.c.b16 %v787, %v786
  %v800 = vpack.c.b16 %v789, %v788
  %v801 = vpack.c.b16 %v791, %v790
  %v802 = vpack.c.b16 %v793, %v792
  %v803 = vpack.c.b16 %v795, %v794
  %812 = vmatprep.subr.bf16.mxu0 0
  %813 = vmatpush1.bf16.msra.mxu0 %v796
  %814 = vmatprep.subr.bf16.mxu0 0
  %815 = vmatpush1.bf16.msra.mxu0 %v797
  %816 = vmatprep.subr.bf16.mxu0 0
  %817 = vmatpush1.bf16.msra.mxu0 %v798
  %818 = vmatprep.subr.bf16.mxu0 0
  %819 = vmatpush1.bf16.msra.mxu0 %v799
  %820 = vmatprep.subr.bf16.mxu0 0
  %821 = vmatpush1.bf16.msra.mxu0 %v800
  %822 = vmatprep.subr.bf16.mxu0 0
  %823 = vmatpush1.bf16.msra.mxu0 %v801
  %824 = vmatprep.subr.bf16.mxu0 0
  %825 = vmatpush1.bf16.msra.mxu0 %v802
  %826 = vmatprep.subr.bf16.mxu0 0
  %827 = vmatpush1.bf16.msra.mxu0 %v803
  %828 = vmatprep.subr.bf16.mxu0 0
  %829 = vmatpush1.bf16.msra.mxu0 0
  %830 = vmatprep.subr.bf16.mxu0 0
  %831 = vmatpush1.bf16.msra.mxu0 0
  %832 = vmatprep.subr.bf16.mxu0 0
  %833 = vmatpush1.bf16.msra.mxu0 0
  %834 = vmatprep.subr.bf16.mxu0 0
  %835 = vmatpush1.bf16.msra.mxu0 0
  %836 = vmatprep.subr.bf16.mxu0 0
  %837 = vmatpush1.bf16.msra.mxu0 0
  %838 = vmatprep.subr.bf16.mxu0 0
  %839 = vmatpush1.bf16.msra.mxu0 0
  %840 = vmatprep.subr.bf16.mxu0 0
  %841 = vmatpush1.bf16.msra.mxu0 0
  %842 = vmatprep.subr.bf16.mxu0 0
  %843 = vmatpush1.bf16.msra.mxu0 0
  %844 = vmatprep.mubr.bf16.mxu0 0
  %845 = vmatmul.mubr.bf16.gmra.mrb[0].mxu0 %v745
  %v846 = vpop.f32.mrb[0].mxu0
  %v847 = vadd.f32 0.0, %v846
  %v848 = vpop.f32.mrb[0].mxu0
  %v849 = vpop.f32.mrb[0].mxu0
  %v850 = vadd.f32 0.0, %v849
  %v851 = vpop.f32.mrb[0].mxu0
  %852 = vmatprep.mubr.bf16.mxu0 0
  %853 = vmatmul.mubr.bf16.gmra.mrb[0].mxu0 %v746
  %v854 = vpop.f32.mrb[0].mxu0
  %v855 = vadd.f32 0.0, %v854
  %v856 = vpop.f32.mrb[0].mxu0
  %v857 = vpop.f32.mrb[0].mxu0
  %v858 = vadd.f32 0.0, %v857
  %v859 = vpop.f32.mrb[0].mxu0
  %860 = vdwg.mxu0
  %v861 = vadd.f32 %v731, %v847
  %v862 = vadd.f32 %v734, %v850
  %v863 = vadd.f32 %v739, %v855
  %v864 = vadd.f32 %v742, %v858
  %v865 = vadd.f32 %v861, %v862
  %v866 = vadd.f32 %v865, %v863
  %v867 = vadd.f32 %v866, %v864
  %v868 = vrot.slane %v867, 4
  %v869 = vadd.f32 %v867, %v868
  %v870 = vrot.slane %v869, 2
  %v871 = vadd.f32 %v869, %v870
  %v872 = vrot.slane %v871, 1
  %v873 = vadd.f32 %v871, %v872
  %874 = vrot.lane.b32.xlu0 %v873, 8
  %v875 = vpop.permute.xlu0 %874
  %v876 = vadd.f32 %v873, %v875
  %877 = vrot.lane.b32.xlu0 %v876, 16
  %v878 = vpop.permute.xlu0 %877
  %v879 = vadd.f32 %v876, %v878
  %880 = vrot.lane.b32.xlu0 %v879, 32
  %v881 = vpop.permute.xlu0 %880
  %v882 = vadd.f32 %v879, %v881
  %883 = vrot.lane.b32.xlu0 %v882, 64
  %v884 = vpop.permute.xlu0 %883
  %v885 = vadd.f32 %v882, %v884
  %v886 = vmul.f32 %v861, %v861
  %v887 = vmul.f32 %v862, %v862
  %v888 = vmul.f32 %v863, %v863
  %v889 = vmul.f32 %v864, %v864
  %v890 = vadd.f32 %v886, %v887
  %v891 = vadd.f32 %v890, %v888
  %v892 = vadd.f32 %v891, %v889
  %v893 = vrot.slane %v892, 4
  %v894 = vadd.f32 %v892, %v893
  %v895 = vrot.slane %v894, 2
  %v896 = vadd.f32 %v894, %v895
  %v897 = vrot.slane %v896, 1
  %v898 = vadd.f32 %v896, %v897
  %899 = vrot.lane.b32.xlu0 %v898, 8
  %v900 = vpop.permute.xlu0 %899
  %v901 = vadd.f32 %v898, %v900
  %902 = vrot.lane.b32.xlu0 %v901, 16
  %v903 = vpop.permute.xlu0 %902
  %v904 = vadd.f32 %v901, %v903
  %905 = vrot.lane.b32.xlu0 %v904, 32
  %v906 = vpop.permute.xlu0 %905
  %v907 = vadd.f32 %v904, %v906
  %908 = vrot.lane.b32.xlu0 %v907, 64
  %v909 = vpop.permute.xlu0 %908
  %v910 = vadd.f32 %v907, %v909
  %v911 = vmul.f32 %v885, 0.001953125
  %v912 = vmul.f32 %v910, 0.001953125
  %v913 = vmul.f32 %v911, %v911
  %v914 = vsub.f32 %v912, %v913
  %v915 = vmax.f32 %v914, 0.0
  %v916 = vld [vmem:[%s5] sm:$0x1]
  %v917 = vadd.f32 %v915, 1e-05
  %v918 = vrsqrt.pop %v917
  %v919 = vmul.f32 %v916, %v918
  %v920 = vld [vmem:[%s6] sm:$0x1]
  %v921 = vmul.f32 %v911, %v919
  %v922 = vsub.f32 %v920, %v921
  %v924 = vlaneseq
  %v925 = vshrl.u32 %v924, 7
  %v926 = vsub.s32 0, %v925
  %v927 = vrot.slane %v919, %v926
  %v929 = vmul.f32 %v861, %v927
  %v930 = vmul.f32 %v862, %v927
  %v931 = vmul.f32 %v863, %v927
  %v932 = vmul.f32 %v864, %v927
  %v934 = vlaneseq
  %v935 = vshrl.u32 %v934, 7
  %v936 = vsub.s32 0, %v935
  %v937 = vrot.slane %v922, %v936
  %v939 = vadd.f32 %v929, %v937
  %v940 = vadd.f32 %v930, %v937
  %v941 = vadd.f32 %v931, %v937
  %v942 = vadd.f32 %v932, %v937
  %v943 = vmax.f32 %v939, 0.0
  %v944 = vmax.f32 %v940, 0.0
  %v945 = vmax.f32 %v941, 0.0
  %v946 = vmax.f32 %v942, 0.0
  %947 = vst [vmem:[%s7] sm:$0xff] %v943
  %948 = vst [vmem:[%s7 + $0x8] sm:$0xff] %v944
  %949 = vst [vmem:[%s7 + $0x10] sm:$0xff] %v945
  %950 = vst [vmem:[%s7 + $0x18] sm:$0xff] %v946
  // Predicated region
  $region30: #{inconv_forward.1} parent=0 // pred_check
    _
  $region31: #{inconv_forward.1} parent=0 // pred_check_branch
    %952 = sbr.rel (0) target = $region33
  $region32: #{inconv_forward.1} parent=0 // pred_region
    _
  $region33: #{inconv_forward.1} parent=0 // pred_fallthru
    _
  // Predicated region
  $region34: #{inconv_forward.1} parent=0 // pred_check
    _
  $region35: #{inconv_forward.1} parent=0 // pred_check_branch
    %954 = sbr.rel (0) target = $region37
  $region36: #{inconv_forward.1} parent=0 // pred_region
    _
  $region37: #{inconv_forward.1} parent=0 // pred_fallthru
    _

</llo_original>
